<compile_context>
chip_gen: v5e
topology: v5e:2x2
jax: 0.10.0
libtpu: 0.0.40
codegen_flags: <defaults>
</compile_context>

<pallas_src>
import jax
import jax.numpy as jnp
from jax.experimental import pallas as pl
from jax.experimental.pallas import tpu as pltpu


_LANE = 128
_TARGET_BLOCK_BYTES = 4 * 1024 * 1024      # ~4 MiB/block -> 4 buffers ~= 16 MiB VMEM
_VMEM_LIMIT_BYTES = 32 * 1024 * 1024       # raise v5e's 16 MiB default; safe on v7x


def _identity_kernel(x_ref, o_ref):
    # Straight VMEM tile copy (elementwise identity). With in/out aliased this
    # writes back into the same HBM buffer it was read from.
    o_ref[...] = x_ref[...]


def _sublane_multiple(dtype) -> int:
    """Dtype-native sublane packing: 8 for 32-bit, 16 for 16-bit, 32 for 8-bit."""
    itemsize = jnp.dtype(dtype).itemsize
    if itemsize >= 4:
        return 8
    return 32 // itemsize


def _choose_cols(total: int):
    """Largest lane-dense width (multiple of 128) dividing `total`, capped at 8192."""
    if total % _LANE != 0:
        return None
    for cols in (8192, 4096, 2048, 1024, 512, 384, 256, 128):
        if total % cols == 0:
            return cols
    return _LANE  # unreachable (128 always divides), kept for clarity


def identity(x: jax.Array) -> jax.Array:
    """True identity forward pass: the optimal implementation is a no-op."""
    return x


def identity_pallas(x: jax.Array) -> jax.Array:
    """Identity forward pass expressed as a single aliased Pallas copy kernel."""
    if x.ndim == 0 or x.size == 0:
        return x  # scalar / empty: nothing to copy

    total = int(x.size)
    dtype = x.dtype
    itemsize = jnp.dtype(dtype).itemsize
    sublane = _sublane_multiple(dtype)

    cols = _choose_cols(total)
    if cols is not None:
        # Lane-dense 2D slab (rows, cols); cols is a large multiple of 128.
        rows = total // cols
        x2d = x.reshape(rows, cols)
        target_rows = max(1, _TARGET_BLOCK_BYTES // (cols * itemsize))
        tile_rows = min(rows, target_rows)
        tile_rows = (tile_rows // sublane) * sublane
        if tile_rows == 0:
            tile_rows = rows  # rows < sublane: single block equal to full dims
        grid = (pl.cdiv(rows, tile_rows),)   # partial tail block handled by Pallas
        block = (tile_rows, cols)
        index_map = lambda i: (i, 0)
    else:
        # total not a multiple of 128: tile along a single lane-major row;
        # block width is a multiple of 128 (tail masked) or the full extent.
        x2d = x.reshape(1, total)
        max_cols = max(_LANE, (_TARGET_BLOCK_BYTES // itemsize) // _LANE * _LANE)
        tile_cols = total if total <= max_cols else max_cols
        grid = (pl.cdiv(total, tile_cols),)
        block = (1, tile_cols)
        index_map = lambda i: (0, i)

    y2d = pl.pallas_call(
        _identity_kernel,
        out_shape=jax.ShapeDtypeStruct(x2d.shape, dtype),
        grid_spec=pltpu.PrefetchScalarGridSpec(
            num_scalar_prefetch=0,
            grid=grid,
            in_specs=[pl.BlockSpec(block, index_map)],
            out_specs=pl.BlockSpec(block, index_map),
        ),
        input_output_aliases={0: 0},  # donate input buffer; copy in place
        cost_estimate=pl.CostEstimate(
            flops=0,
            transcendentals=0,
            bytes_accessed=2 * total * itemsize,
        ),
        compiler_params=pltpu.CompilerParams(
            dimension_semantics=("parallel",),   # lets v7x's 2 TCs split the copy
            vmem_limit_bytes=_VMEM_LIMIT_BYTES,
        ),
    )(x2d)

    return y2d.reshape(x.shape)


if __name__ == "__main__":
    key = jax.random.PRNGKey(0)
    # Small NCHW input consistent with how Identity is used (replacing a head).
    x = jax.random.normal(key, (2, 4, 16, 16), dtype=jnp.float32)

    y = identity_pallas(x)
    y = jax.block_until_ready(y)

    assert y.shape == x.shape and y.dtype == x.dtype
    assert bool(jnp.all(y == x))
    print("KERNEL_OK")
</pallas_src>

<mosaic_0001>
module attributes {stable_mosaic.version = 11 : i64} {
  func.func @_identity_kernel(%arg0: i32, %arg1: memref<1x2048xf32, #tpu.memory_space<vmem>>, %arg2: memref<1x2048xf32, #tpu.memory_space<vmem>>) attributes {dimension_semantics = [#tpu.dimension_semantics<parallel>], iteration_bounds = array<i64: 1>, scalar_prefetch = 0 : i64, scratch_operands = 0 : i64, tpu.core_type = #tpu.core_type<tc>, window_params = [{transform_indices = @transform_0, window_bounds = array<i64: 1, 2048>}, {transform_indices = @transform_1, window_bounds = array<i64: 1, 2048>}]} {
    %c0 = arith.constant 0 : index
    %c0_0 = arith.constant 0 : index
    %0 = vector.load %arg1[%c0, %c0_0] : memref<1x2048xf32, #tpu.memory_space<vmem>>, vector<1x2048xf32>
    %c0_1 = arith.constant 0 : index
    %c0_2 = arith.constant 0 : index
    %1 = vector.load %arg2[%c0_1, %c0_2] : memref<1x2048xf32, #tpu.memory_space<vmem>>, vector<1x2048xf32>
    tpu.vector_store %arg2[%c0_1, %c0_2], %0 {strides = array<i32>} : memref<1x2048xf32, #tpu.memory_space<vmem>>, vector<1x2048xf32>,
    return
  }
  func.func @transform_0(%arg0: i32) -> (i32, i32) {
    %c0_i32 = arith.constant 0 : i32
    %c0_i32_0 = arith.constant 0 : i32
    return %arg0, %c0_i32 : i32, i32
  }
  func.func @transform_1(%arg0: i32) -> (i32, i32) {
    %c0_i32 = arith.constant 0 : i32
    %c0_i32_0 = arith.constant 0 : i32
    return %arg0, %c0_i32 : i32, i32
  }
}

</mosaic_0001>

<llo_original>
// kernel: tpu_custom_call.1
$region0: #{tpu_custom_call.1}
  #allocation0 [shape = 'u32[]', space=smem, size = 0x4, offset = 0x4, fixed_abs, tag = 'smem constant byte address 0x4 - core index']
  #allocation1 [shape = 'u32[72,128]{1,0:T(1,128)}', space=vmem, size = 0x9000, scoped, tag = 'internal scratch']
  %s0 = inlined_call_operand.hbm [shape: f32[1,2048], index: 0, kind: input, shape index: {}, may-alias: {0,1}]
  %s1 = inlined_call_operand.hbm [shape: f32[1,2048], index: 1, kind: output, shape index: {}, may-alias: {0,1}]
  %s2 = sld [smem:[#allocation0]]
  $region18: #{tpu_custom_call.1} parent=0
    _
  %s4 = ssub.s32 1, %s2
  %s5 = scalar_select 0, %s4, %s2
  $region1: #{tpu_custom_call.1} parent=0
    #allocation2 [shape = 'u8[8192]{0}', space=vmem, size = 0x2000, scoped, tag = 'input window, operand 0, single buffered']
    #allocation3 [shape = 's32[1]{0}', space=sflag, size = 0x4, scoped, tag = 'scoped memory for tpu_custom_call.1']
    #allocation4 [shape = 's32[1]{0}', space=sflag, size = 0x4, scoped, tag = 'scoped memory for tpu_custom_call.1']
    #allocation5 [shape = 'u8[8192]{0}', space=vmem, size = 0x2000, scoped, tag = 'output window, operand 0, single buffered']
    %6 = vsyncpa [#allocation3], 0
    %7 = vsyncpa [#allocation4], 0
    // Predicated region
    $region2: #{tpu_custom_call.1} parent=1 // pred_check
      _
    $region3: #{tpu_custom_call.1} parent=1 // pred_check_branch
      %9 = sbr.rel (0) target = $region5
    $region4: #{tpu_custom_call.1} parent=1 // pred_region
      %11 = vsyncadd [#allocation3], 0
      %s13 = sshll.u32 %s0, 4
      %s14 = int_to_ptr.hbm [resolvable:$true] %s13
      %s15 = sshll.u32 [#allocation2], 4
      %s16 = int_to_ptr.vmem [resolvable:$true] %s15
      %18 = dma.hbm_to_vmem [thread:$0]  %s14, 256, %s16, [#allocation3]
    $region5: #{tpu_custom_call.1} parent=1 // pred_fallthru
      _
    // Predicated region
    $region6: #{tpu_custom_call.1} parent=1 // pred_check
      _
    $region7: #{tpu_custom_call.1} parent=1 // pred_check_branch
      %20 = sbr.rel (0) target = $region9
    $region8: #{tpu_custom_call.1} parent=1 // pred_region
      %22 = dma.done [#allocation3], 256
    $region9: #{tpu_custom_call.1} parent=1 // pred_fallthru
      _
    %v23 = vld [vmem:[#allocation2] sm:$0xff]
    %v24 = vld [vmem:[#allocation2 + $0x8] sm:$0xff]
    %25 = vst [vmem:[#allocation5] sm:$0xff] %v23
    %26 = vst [vmem:[#allocation5 + $0x8] sm:$0xff] %v24
    // Predicated region
    $region10: #{tpu_custom_call.1} parent=1 // pred_check
      _
    $region11: #{tpu_custom_call.1} parent=1 // pred_check_branch
      %28 = sbr.rel (0) target = $region13
    $region12: #{tpu_custom_call.1} parent=1 // pred_region
      %30 = vsyncadd [#allocation4], 0
      %s32 = sshll.u32 [#allocation5], 4
      %s33 = int_to_ptr.vmem [resolvable:$true] %s32
      %s34 = sshll.u32 %s1, 4
      %s35 = int_to_ptr.hbm [resolvable:$true] %s34
      %37 = dma.vmem_to_hbm [thread:$0]  %s33, 256, %s35, [#allocation4]
    $region13: #{tpu_custom_call.1} parent=1 // pred_fallthru
      _
    // Predicated region
    $region14: #{tpu_custom_call.1} parent=1 // pred_check
      _
    $region15: #{tpu_custom_call.1} parent=1 // pred_check_branch
      %39 = sbr.rel (0) target = $region17
    $region16: #{tpu_custom_call.1} parent=1 // pred_region
      %41 = dma.done [#allocation4], 256
    $region17: #{tpu_custom_call.1} parent=1 // pred_fallthru
      _
    %42 = vsyncpa [#allocation3], 1
    %43 = vsyncpa [#allocation4], 1

</llo_original>
